<compile_context>
chip_gen: v7x
topology: tpu7x:2x2x1
jax: 0.10.0
libtpu: 0.0.40
codegen_flags: <defaults>
</compile_context>

<pallas_src>
import functools
import math

import jax
import jax.numpy as jnp
from jax.experimental import pallas as pl
from jax.experimental.pallas import tpu as pltpu

LANE = 128
VROWS = 8     # packed per-layer channel vectors: dskip, gamma, beta, b1, b2 (+pad)


def _round_up(x, m):
    return ((x + m - 1) // m) * m


# ----------------------------------------------------------------------------
# Fused per-(batch, layer) Pallas kernel
# ----------------------------------------------------------------------------
def s4enc_block_kernel(feat_ref, w_emb_ref, b_emb_ref, coef_ref, vecs_ref,
                       wo_ref, w_dec_ref, b_dec_ref, out_ref, h_ref,
                       *, prenorm, d_true, d_pad):
    """One grid step = one (batch element, S4 layer) pair.

    feat_ref : (T, Fp)      flattened frames for this batch element (f32)
    w_emb_ref: (Fp, Dp) bf16      b_emb_ref: (1, Dp) f32
    coef_ref : (T, T, Dp)   masked conv coefficients for this layer (f32)
    vecs_ref : (VROWS, Dp)  rows: 0=dskip 1=gamma 2=beta 3=b1 4=b2 (f32)
    wo_ref   : (Dp, 2*Dp)   fused GLU weight [W1 | W2] (bf16)
    w_dec_ref: (Dp, Rp) bf16      b_dec_ref: (1, Rp) f32
    out_ref  : (T, Rp)      decoder output for this batch element (f32)
    h_ref    : (T, Dp) f32  VMEM scratch carrying the residual stream across
                            the layer grid axis.
    """
    T = feat_ref.shape[0]
    layer = pl.program_id(1)
    nlayers = pl.num_programs(1)
    inv_d = 1.0 / float(d_true)

    def layer_norm(v, gamma, beta):
        # One-pass E[x^2]-mu^2 with the TRUE model_dim divisor; padded lanes
        # of v are exactly 0 so the statistics are unperturbed.
        mu = jnp.sum(v, axis=-1, keepdims=True) * inv_d
        ex2 = jnp.sum(v * v, axis=-1, keepdims=True) * inv_d
        var = jnp.maximum(ex2 - mu * mu, 0.0)
        return (v - mu) * jax.lax.rsqrt(var + 1e-5) * gamma + beta

    def erf(x):
        # Abramowitz & Stegun 7.1.26 (|err| < 1.5e-7): exp + EUP reciprocal,
        # no VALU divide chain.
        a1, a2, a3, a4, a5 = (0.254829592, -0.284496736, 1.421413741,
                              -1.453152027, 1.061405429)
        p = 0.3275911
        sgn = jnp.where(x >= 0.0, 1.0, -1.0)
        ax = x * sgn
        t = pl.reciprocal(1.0 + p * ax, approx=True)
        poly = ((((a5 * t + a4) * t + a3) * t + a2) * t + a1) * t
        return sgn * (1.0 - poly * jnp.exp(-ax * ax))

    def gelu(x):
        return 0.5 * x * (1.0 + erf(x * 0.7071067811865476))

    # ----- embed (once per batch element, at the first layer step) -----
    @pl.when(layer == 0)
    def _embed():
        h0 = jnp.dot(feat_ref[...].astype(jnp.bfloat16), w_emb_ref[...],
                     preferred_element_type=jnp.float32) + b_emb_ref[0, :]
        h_ref[...] = h0                                   # 'enc_s4_emb'

    # ----- one S4 block (every grid step) -----
    vecs = vecs_ref[...]
    dskip = vecs[0, :]
    gamma = vecs[1, :]
    beta = vecs[2, :]
    b1 = vecs[3, :]
    b2 = vecs[4, :]

    h = h_ref[...]
    z = layer_norm(h, gamma, beta) if prenorm else h

    # Causal per-channel convolution along time (time = sublane axis):
    #   y[t, d] = sum_{tau<=t} K[tau, d] * z[t - tau, d]
    # roll() wraps; the host-precomputed coef is zero for t < tau so wrapped
    # elements never contribute.  No concats, no misaligned slices, no
    # per-tau broadcasts.
    # TODO(synk): for long T switch to a chunked diagonal-SSM recurrence.
    y = coef_ref[0] * z
    for tau in range(1, T):
        y = y + coef_ref[tau] * pltpu.roll(z, shift=tau, axis=0)
    y = y + z * dskip                                     # learned D-skip
    y = gelu(y)                                           # exact-erf GELU

    # Output linear (D -> 2D) as ONE fused lane-aligned matmul, then GLU.
    u = jnp.dot(y.astype(jnp.bfloat16), wo_ref[...],
                preferred_element_type=jnp.float32)       # (T, 2*Dp)
    u1 = u[:, :d_pad] + b1                                # free 128-lane split
    u2 = u[:, d_pad:] + b2
    g = u1 * jax.nn.sigmoid(u2)

    # dropout = identity (eval mode); residual add
    h = g + h
    if not prenorm:
        h = layer_norm(h, gamma, beta)
    h_ref[...] = h

    # ----- decoder (once per batch element, at the last layer step) -----
    @pl.when(layer == nlayers - 1)
    def _decode():
        out = jnp.dot(h.astype(jnp.bfloat16), w_dec_ref[...],
                      preferred_element_type=jnp.float32) + b_dec_ref[0, :]
        out_ref[...] = out.astype(out_ref.dtype)          # 'enc_s4_dec'


# ----------------------------------------------------------------------------
# Wrapper: grid over (batch, layer), weights streamed per layer
# ----------------------------------------------------------------------------
def s4enc_forward(x, packed, *, prenorm=True):
    F, D, R, T, L, Fp, Dp, Rp = packed['dims']
    B = x.shape[0]
    assert x.shape[1] == T
    feat = x.reshape(B, T, -1).astype(jnp.float32)        # 'b t c h w -> b t (c h w)'
    assert feat.shape[-1] == F
    feat_p = jnp.pad(feat, ((0, 0), (0, 0), (0, Fp - F)))  # lane-dense input

    kernel = functools.partial(s4enc_block_kernel,
                               prenorm=prenorm, d_true=D, d_pad=Dp)

    out_p = pl.pallas_call(
        kernel,
        grid=(B, L),
        in_specs=[
            pl.BlockSpec((None, T, Fp), lambda b, l: (b, 0, 0)),      # feat
            pl.BlockSpec((Fp, Dp), lambda b, l: (0, 0)),              # W_emb
            pl.BlockSpec((1, Dp), lambda b, l: (0, 0)),               # b_emb
            pl.BlockSpec((None, T, T, Dp), lambda b, l: (l, 0, 0, 0)),  # coef
            pl.BlockSpec((None, VROWS, Dp), lambda b, l: (l, 0, 0)),  # vecs
            pl.BlockSpec((None, Dp, 2 * Dp), lambda b, l: (l, 0, 0)),  # Wo fused
            pl.BlockSpec((Dp, Rp), lambda b, l: (0, 0)),              # W_dec
            pl.BlockSpec((1, Rp), lambda b, l: (0, 0)),               # b_dec
        ],
        out_specs=pl.BlockSpec((None, T, Rp), lambda b, l: (b, 0, 0)),
        out_shape=jax.ShapeDtypeStruct((B, T, Rp), jnp.float32),
        scratch_shapes=[pltpu.VMEM((T, Dp), jnp.float32)],            # h carry
        compiler_params=pltpu.CompilerParams(
            dimension_semantics=("parallel", "arbitrary")),
        # vmem_limit_bytes: not needed here (<1 MiB resident); set explicitly
        # if D / nlayers grow and weights are kept resident instead.
    )(feat_p, packed['W_emb'], packed['b_emb'], packed['coef'],
      packed['vecs'], packed['Wo'], packed['W_dec'], packed['b_dec'])

    return out_p[:, :, :R]                                # drop lane padding


# ----------------------------------------------------------------------------
# Parameter setup (plain JAX glue; deterministic synthetic init)
# ----------------------------------------------------------------------------
def s4d_conv_kernel(key, d_model, d_state, seq_len):
    """S4D-Lin style convolution kernel K, time-major (T, D)."""
    k_dt, k_cr, k_ci = jax.random.split(key, 3)
    log_dt = (jax.random.uniform(k_dt, (d_model,))
              * (math.log(0.1) - math.log(0.001)) + math.log(0.001))
    dt = jnp.exp(log_dt)                                    # (D,)
    A = -0.5 + 1j * jnp.pi * jnp.arange(d_state)            # (N,)
    A = jnp.broadcast_to(A, (d_model, d_state))             # (D, N)
    C = (jax.random.normal(k_cr, (d_model, d_state))
         + 1j * jax.random.normal(k_ci, (d_model, d_state))) * (0.5 ** 0.5)
    dtA = dt[:, None] * A                                   # (D, N)
    dA = jnp.exp(dtA)
    Bbar = (dA - 1.0) / A
    powers = dA[:, :, None] ** jnp.arange(seq_len)[None, None, :]    # (D, N, T)
    K = 2.0 * jnp.real(jnp.einsum('dn,dnt->dt', C * Bbar, powers))   # (D, T)
    return K.T.astype(jnp.float32)                                   # (T, D)


def init_params(key, in_dim, model_dim, nlayers, repr_dim, d_state, seq_len):
    keys = jax.random.split(key, 2 + nlayers)
    params = {
        'in_dim': in_dim, 'model_dim': model_dim, 'repr_dim': repr_dim,
        'nlayers': nlayers, 'seq_len': seq_len,
        'W_emb': jax.random.normal(keys[0], (in_dim, model_dim), jnp.float32)
                 / math.sqrt(in_dim),
        'b_emb': jnp.zeros((model_dim,), jnp.float32),
        'W_dec': jax.random.normal(keys[1], (model_dim, repr_dim), jnp.float32)
                 / math.sqrt(model_dim),
        'b_dec': jnp.zeros((repr_dim,), jnp.float32),
        'layers': [],
    }
    for li in range(nlayers):
        lk = jax.random.split(keys[2 + li], 4)
        params['layers'].append({
            'kT': s4d_conv_kernel(lk[0], model_dim, d_state, seq_len),   # (T, D)
            'dskip': jax.random.normal(lk[1], (model_dim,), jnp.float32),
            'gamma': jnp.ones((model_dim,), jnp.float32),
            'beta': jnp.zeros((model_dim,), jnp.float32),
            'Wo': jax.random.normal(lk[2], (model_dim, 2 * model_dim),
                                    jnp.float32) / math.sqrt(model_dim),
            'bo': jnp.zeros((2 * model_dim,), jnp.float32),
        })
    return params


def pack_params(params):
    """Zero-pad every channel axis to 128 lanes; fuse GLU weight; precompute
    masked conv coefficients.  Matmul weights stored bf16 (f32 accumulation in
    the kernel); everything touched by VPU math stays f32."""
    F, D, R = params['in_dim'], params['model_dim'], params['repr_dim']
    T, L = params['seq_len'], params['nlayers']
    Fp, Dp, Rp = _round_up(F, LANE), _round_up(D, LANE), _round_up(R, LANE)

    W_emb = jnp.zeros((Fp, Dp), jnp.float32).at[:F, :D].set(params['W_emb'])
    b_emb = jnp.zeros((1, Dp), jnp.float32).at[0, :D].set(params['b_emb'])
    W_dec = jnp.zeros((Dp, Rp), jnp.float32).at[:D, :R].set(params['W_dec'])
    b_dec = jnp.zeros((1, Rp), jnp.float32).at[0, :R].set(params['b_dec'])

    # causal[tau, t] = 1.0 iff t >= tau
    causal = (jnp.arange(T)[None, :] >= jnp.arange(T)[:, None]).astype(jnp.float32)

    vecs, wo, coef = [], [], []
    for layer in params['layers']:
        v = jnp.zeros((VROWS, Dp), jnp.float32)
        v = v.at[0, :D].set(layer['dskip'])
        v = v.at[1, :D].set(layer['gamma'])
        v = v.at[2, :D].set(layer['beta'])
        v = v.at[3, :D].set(layer['bo'][:D])     # GLU value-half bias
        v = v.at[4, :D].set(layer['bo'][D:])     # GLU gate-half bias
        vecs.append(v)

        w = jnp.zeros((Dp, 2 * Dp), jnp.float32)
        w = w.at[:D, :D].set(layer['Wo'][:, :D])           # value half
        w = w.at[:D, Dp:Dp + D].set(layer['Wo'][:, D:])    # gate half
        wo.append(w)

        # coef[tau, t, d] = K[tau, d] * (t >= tau): causal mask folded in so
        # the kernel's lag sum is pure (roll, mul, add).
        c = causal[:, :, None] * layer['kT'][:, None, :]   # (T, T, D)
        coef.append(jnp.zeros((T, T, Dp), jnp.float32).at[:, :, :D].set(c))

    bf16 = jnp.bfloat16
    return {
        'W_emb': W_emb.astype(bf16), 'b_emb': b_emb,
        'W_dec': W_dec.astype(bf16), 'b_dec': b_dec,
        'Wo': jnp.stack(wo).astype(bf16),
        'vecs': jnp.stack(vecs), 'coef': jnp.stack(coef),
        'dims': (F, D, R, T, L, Fp, Dp, Rp),
    }


# ----------------------------------------------------------------------------
# Pure-JAX reference (mimics the kernel's bf16 matmul inputs, f32 elsewhere)
# ----------------------------------------------------------------------------
def s4enc_reference(x, params, *, prenorm=True):
    D, T = params['model_dim'], params['seq_len']
    B = x.shape[0]
    feat = x.reshape(B, T, -1).astype(jnp.float32)

    def mm(a, w):
        return jnp.dot(a.astype(jnp.bfloat16).astype(jnp.float32),
                       w.astype(jnp.bfloat16).astype(jnp.float32))

    def ln(v, g, b):
        mu = jnp.mean(v, axis=-1, keepdims=True)
        var = jnp.mean((v - mu) ** 2, axis=-1, keepdims=True)
        return (v - mu) / jnp.sqrt(var + 1e-5) * g + b

    h = mm(feat, params['W_emb']) + params['b_emb']
    for layer in params['layers']:
        z = ln(h, layer['gamma'], layer['beta']) if prenorm else h
        kT = layer['kT']                                   # (T, D)
        y = jnp.zeros_like(z)
        for tau in range(T):
            y = y.at[:, tau:, :].add(kT[tau][None, None, :] * z[:, :T - tau, :])
        y = y + z * layer['dskip']
        y = jax.nn.gelu(y, approximate=False)
        u = mm(y, layer['Wo']) + layer['bo']
        g = u[..., :D] * jax.nn.sigmoid(u[..., D:])
        h = g + h
        if not prenorm:
            h = ln(h, layer['gamma'], layer['beta'])
    return mm(h, params['W_dec']) + params['b_dec']


# ----------------------------------------------------------------------------
if __name__ == "__main__":
    # small, module-consistent shapes
    B, T, C, H, W = 2, 8, 4, 4, 4          # input (B, L, C, H, W)
    F = C * H * W                          # 64, LazyLinear infers this
    model_dim = 32
    nlayers = 2
    repr_dim = 16
    d_state = 16
    prenorm = True                         # cfg.model.encoder.prenorm
    # TODO(synk): dropout layers are identity here (eval-mode forward only);
    # the `return_activations` dict / `lengths` masking of the PyTorch module
    # are not materialized.

    root = jax.random.PRNGKey(0)
    kx, kp = jax.random.split(root)
    x = jax.random.normal(kx, (B, T, C, H, W), jnp.float32)

    params = init_params(kp, F, model_dim, nlayers, repr_dim, d_state, T)
    packed = pack_params(params)

    out = s4enc_forward(x, packed, prenorm=prenorm)
    out = jax.block_until_ready(out)
    assert out.shape == (B, T, repr_dim), out.shape
    assert bool(jnp.all(jnp.isfinite(out)))

    ref = s4enc_reference(x, params, prenorm=prenorm)
    max_err = float(jnp.max(jnp.abs(out - ref)))
    assert bool(jnp.allclose(out, ref, rtol=5e-2, atol=5e-2)), \
        f"kernel/reference mismatch, max abs err = {max_err}"

    print("KERNEL_OK")
</pallas_src>

<mosaic_0001>
module attributes {stable_mosaic.version = 11 : i64} {
  func.func @s4enc_block_kernel(%arg0: i32, %arg1: i32, %arg2: memref<1x8x128xf32, #tpu.memory_space<vmem>>, %arg3: memref<128x128xbf16, #tpu.memory_space<vmem>>, %arg4: memref<1x128xf32, #tpu.memory_space<vmem>>, %arg5: memref<1x8x8x128xf32, #tpu.memory_space<vmem>>, %arg6: memref<1x8x128xf32, #tpu.memory_space<vmem>>, %arg7: memref<1x128x256xbf16, #tpu.memory_space<vmem>>, %arg8: memref<128x128xbf16, #tpu.memory_space<vmem>>, %arg9: memref<1x128xf32, #tpu.memory_space<vmem>>, %arg10: memref<1x8x128xf32, #tpu.memory_space<vmem>>, %arg11: memref<8x128xf32, #tpu.memory_space<vmem>>) attributes {dimension_semantics = [#tpu.dimension_semantics<parallel>, #tpu.dimension_semantics<arbitrary>], iteration_bounds = array<i64: 2, 2>, scalar_prefetch = 0 : i64, scratch_operands = 1 : i64, tpu.core_type = #tpu.core_type<tc>, window_params = [{transform_indices = @transform_0, window_bounds = array<i64: 1, 8, 128>}, {pipeline_mode = #tpu.pipeline_mode<synchronous>, transform_indices = @transform_1, window_bounds = array<i64: 128, 128>}, {pipeline_mode = #tpu.pipeline_mode<synchronous>, transform_indices = @transform_2, window_bounds = array<i64: 1, 128>}, {transform_indices = @transform_3, window_bounds = array<i64: 1, 8, 8, 128>}, {transform_indices = @transform_4, window_bounds = array<i64: 1, 8, 128>}, {transform_indices = @transform_5, window_bounds = array<i64: 1, 128, 256>}, {pipeline_mode = #tpu.pipeline_mode<synchronous>, transform_indices = @transform_6, window_bounds = array<i64: 128, 128>}, {pipeline_mode = #tpu.pipeline_mode<synchronous>, transform_indices = @transform_7, window_bounds = array<i64: 1, 128>}, {transform_indices = @transform_8, window_bounds = array<i64: 1, 8, 128>}]} {
    %c0_i32 = arith.constant 0 : i32
    %0 = arith.cmpi eq, %arg1, %c0_i32 : i32
    %1 = arith.extui %0 : i1 to i32
    %c0_i32_0 = arith.constant 0 : i32
    %2 = arith.cmpi ne, %1, %c0_i32_0 : i32
    scf.if %2 {
      %c0_59 = arith.constant 0 : index
      %c0_60 = arith.constant 0 : index
      %c0_61 = arith.constant 0 : index
      %147 = vector.load %arg2[%c0_59, %c0_60, %c0_61] : memref<1x8x128xf32, #tpu.memory_space<vmem>>, vector<1x8x128xf32>
      %148 = vector.shape_cast %147 : vector<1x8x128xf32> to vector<8x128xf32>
      %149 = arith.truncf %148 : vector<8x128xf32> to vector<8x128xbf16>
      %c0_62 = arith.constant 0 : index
      %c0_63 = arith.constant 0 : index
      %150 = vector.load %arg3[%c0_62, %c0_63] : memref<128x128xbf16, #tpu.memory_space<vmem>>, vector<128x128xbf16>
      %cst_64 = arith.constant dense<0.000000e+00> : vector<8x128xf32>
      %151 = tpu.matmul %149, %150, %cst_64 {dimension_numbers = #tpu.dot_dimension_numbers<[1], [0], [0], [1], [0, 0, 1, 1], [], []>} : vector<8x128xbf16>, vector<128x128xbf16>, vector<8x128xf32> -> vector<8x128xf32>
      %c0_65 = arith.constant 0 : index
      %c0_66 = arith.constant 0 : index
      %152 = vector.load %arg4[%c0_65, %c0_66] : memref<1x128xf32, #tpu.memory_space<vmem>>, vector<1x128xf32>
      %153 = vector.shape_cast %152 : vector<1x128xf32> to vector<128xf32>
      %154 = vector.shape_cast %153 : vector<128xf32> to vector<1x128xf32>
      %155 = vector.broadcast %154 : vector<1x128xf32> to vector<8x128xf32>
      %156 = arith.addf %151, %155 : vector<8x128xf32>
      %c0_67 = arith.constant 0 : index
      %c0_68 = arith.constant 0 : index
      %157 = vector.load %arg11[%c0_67, %c0_68] : memref<8x128xf32, #tpu.memory_space<vmem>>, vector<8x128xf32>
      tpu.vector_store %arg11[%c0_67, %c0_68], %156 {strides = array<i32>} : memref<8x128xf32, #tpu.memory_space<vmem>>, vector<8x128xf32>,
    } else {
    }
    %c0 = arith.constant 0 : index
    %c0_1 = arith.constant 0 : index
    %c0_2 = arith.constant 0 : index
    %3 = vector.load %arg6[%c0, %c0_1, %c0_2] : memref<1x8x128xf32, #tpu.memory_space<vmem>>, vector<1x8x128xf32>
    %4 = vector.shape_cast %3 : vector<1x8x128xf32> to vector<8x128xf32>
    %5 = vector.extract_strided_slice %4 {offsets = [0, 0], sizes = [1, 128], strides = [1, 1]} : vector<8x128xf32> to vector<1x128xf32>
    %6 = vector.shape_cast %5 : vector<1x128xf32> to vector<128xf32>
    %7 = vector.extract_strided_slice %4 {offsets = [1, 0], sizes = [1, 128], strides = [1, 1]} : vector<8x128xf32> to vector<1x128xf32>
    %8 = vector.shape_cast %7 : vector<1x128xf32> to vector<128xf32>
    %9 = vector.extract_strided_slice %4 {offsets = [2, 0], sizes = [1, 128], strides = [1, 1]} : vector<8x128xf32> to vector<1x128xf32>
    %10 = vector.shape_cast %9 : vector<1x128xf32> to vector<128xf32>
    %11 = vector.extract_strided_slice %4 {offsets = [3, 0], sizes = [1, 128], strides = [1, 1]} : vector<8x128xf32> to vector<1x128xf32>
    %12 = vector.shape_cast %11 : vector<1x128xf32> to vector<128xf32>
    %13 = vector.extract_strided_slice %4 {offsets = [4, 0], sizes = [1, 128], strides = [1, 1]} : vector<8x128xf32> to vector<1x128xf32>
    %14 = vector.shape_cast %13 : vector<1x128xf32> to vector<128xf32>
    %c0_3 = arith.constant 0 : index
    %c0_4 = arith.constant 0 : index
    %15 = vector.load %arg11[%c0_3, %c0_4] : memref<8x128xf32, #tpu.memory_space<vmem>>, vector<8x128xf32>
    %cst = arith.constant dense<0.000000e+00> : vector<8xf32>
    %16 = vector.multi_reduction <add>, %15, %cst [1] : vector<8x128xf32> to vector<8xf32>
    %17 = vector.shape_cast %16 : vector<8xf32> to vector<8x1xf32>
    %cst_5 = arith.constant 3.125000e-02 : f32
    %18 = vector.broadcast %cst_5 : f32 to vector<8x1xf32>
    %19 = arith.mulf %17, %18 : vector<8x1xf32>
    %20 = arith.mulf %15, %15 : vector<8x128xf32>
    %cst_6 = arith.constant dense<0.000000e+00> : vector<8xf32>
    %21 = vector.multi_reduction <add>, %20, %cst_6 [1] : vector<8x128xf32> to vector<8xf32>
    %22 = vector.shape_cast %21 : vector<8xf32> to vector<8x1xf32>
    %cst_7 = arith.constant 3.125000e-02 : f32
    %23 = vector.broadcast %cst_7 : f32 to vector<8x1xf32>
    %24 = arith.mulf %22, %23 : vector<8x1xf32>
    %25 = arith.mulf %19, %19 : vector<8x1xf32>
    %26 = arith.subf %24, %25 : vector<8x1xf32>
    %cst_8 = arith.constant 0.000000e+00 : f32
    %27 = vector.broadcast %cst_8 : f32 to vector<8x1xf32>
    %28 = arith.maximumf %26, %27 : vector<8x1xf32>
    %29 = vector.broadcast %19 : vector<8x1xf32> to vector<8x128xf32>
    %30 = arith.subf %15, %29 : vector<8x128xf32>
    %cst_9 = arith.constant 9.99999974E-6 : f32
    %31 = vector.broadcast %cst_9 : f32 to vector<8x1xf32>
    %32 = arith.addf %28, %31 : vector<8x1xf32>
    %33 = math.rsqrt %32 : vector<8x1xf32>
    %34 = vector.broadcast %33 : vector<8x1xf32> to vector<8x128xf32>
    %35 = arith.mulf %30, %34 : vector<8x128xf32>
    %36 = vector.shape_cast %8 : vector<128xf32> to vector<1x128xf32>
    %37 = vector.broadcast %36 : vector<1x128xf32> to vector<8x128xf32>
    %38 = arith.mulf %35, %37 : vector<8x128xf32>
    %39 = vector.shape_cast %10 : vector<128xf32> to vector<1x128xf32>
    %40 = vector.broadcast %39 : vector<1x128xf32> to vector<8x128xf32>
    %41 = arith.addf %38, %40 : vector<8x128xf32>
    %c0_10 = arith.constant 0 : index
    %c0_11 = arith.constant 0 : index
    %c0_12 = arith.constant 0 : index
    %c0_13 = arith.constant 0 : index
    %42 = vector.load %arg5[%c0_10, %c0_11, %c0_12, %c0_13] : memref<1x8x8x128xf32, #tpu.memory_space<vmem>>, vector<1x1x8x128xf32>
    %43 = vector.shape_cast %42 : vector<1x1x8x128xf32> to vector<8x128xf32>
    %44 = arith.mulf %43, %41 : vector<8x128xf32>
    %c0_14 = arith.constant 0 : index
    %c1 = arith.constant 1 : index
    %c0_15 = arith.constant 0 : index
    %c0_16 = arith.constant 0 : index
    %45 = vector.load %arg5[%c0_14, %c1, %c0_15, %c0_16] : memref<1x8x8x128xf32, #tpu.memory_space<vmem>>, vector<1x1x8x128xf32>
    %46 = vector.shape_cast %45 : vector<1x1x8x128xf32> to vector<8x128xf32>
    %c1_i32 = arith.constant 1 : i32
    %47 = tpu.dynamic_rotate %41 by %c1_i32 dim 0 : vector<8x128xf32>, i32 -> vector<8x128xf32>
    %48 = arith.mulf %46, %47 : vector<8x128xf32>
    %49 = arith.addf %44, %48 : vector<8x128xf32>
    %c0_17 = arith.constant 0 : index
    %c2 = arith.constant 2 : index
    %c0_18 = arith.constant 0 : index
    %c0_19 = arith.constant 0 : index
    %50 = vector.load %arg5[%c0_17, %c2, %c0_18, %c0_19] : memref<1x8x8x128xf32, #tpu.memory_space<vmem>>, vector<1x1x8x128xf32>
    %51 = vector.shape_cast %50 : vector<1x1x8x128xf32> to vector<8x128xf32>
    %c2_i32 = arith.constant 2 : i32
    %52 = tpu.dynamic_rotate %41 by %c2_i32 dim 0 : vector<8x128xf32>, i32 -> vector<8x128xf32>
    %53 = arith.mulf %51, %52 : vector<8x128xf32>
    %54 = arith.addf %49, %53 : vector<8x128xf32>
    %c0_20 = arith.constant 0 : index
    %c3 = arith.constant 3 : index
    %c0_21 = arith.constant 0 : index
    %c0_22 = arith.constant 0 : index
    %55 = vector.load %arg5[%c0_20, %c3, %c0_21, %c0_22] : memref<1x8x8x128xf32, #tpu.memory_space<vmem>>, vector<1x1x8x128xf32>
    %56 = vector.shape_cast %55 : vector<1x1x8x128xf32> to vector<8x128xf32>
    %c3_i32 = arith.constant 3 : i32
    %57 = tpu.dynamic_rotate %41 by %c3_i32 dim 0 : vector<8x128xf32>, i32 -> vector<8x128xf32>
    %58 = arith.mulf %56, %57 : vector<8x128xf32>
    %59 = arith.addf %54, %58 : vector<8x128xf32>
    %c0_23 = arith.constant 0 : index
    %c4 = arith.constant 4 : index
    %c0_24 = arith.constant 0 : index
    %c0_25 = arith.constant 0 : index
    %60 = vector.load %arg5[%c0_23, %c4, %c0_24, %c0_25] : memref<1x8x8x128xf32, #tpu.memory_space<vmem>>, vector<1x1x8x128xf32>
    %61 = vector.shape_cast %60 : vector<1x1x8x128xf32> to vector<8x128xf32>
    %c4_i32 = arith.constant 4 : i32
    %62 = tpu.dynamic_rotate %41 by %c4_i32 dim 0 : vector<8x128xf32>, i32 -> vector<8x128xf32>
    %63 = arith.mulf %61, %62 : vector<8x128xf32>
    %64 = arith.addf %59, %63 : vector<8x128xf32>
    %c0_26 = arith.constant 0 : index
    %c5 = arith.constant 5 : index
    %c0_27 = arith.constant 0 : index
    %c0_28 = arith.constant 0 : index
    %65 = vector.load %arg5[%c0_26, %c5, %c0_27, %c0_28] : memref<1x8x8x128xf32, #tpu.memory_space<vmem>>, vector<1x1x8x128xf32>
    %66 = vector.shape_cast %65 : vector<1x1x8x128xf32> to vector<8x128xf32>
    %c5_i32 = arith.constant 5 : i32
    %67 = tpu.dynamic_rotate %41 by %c5_i32 dim 0 : vector<8x128xf32>, i32 -> vector<8x128xf32>
    %68 = arith.mulf %66, %67 : vector<8x128xf32>
    %69 = arith.addf %64, %68 : vector<8x128xf32>
    %c0_29 = arith.constant 0 : index
    %c6 = arith.constant 6 : index
    %c0_30 = arith.constant 0 : index
    %c0_31 = arith.constant 0 : index
    %70 = vector.load %arg5[%c0_29, %c6, %c0_30, %c0_31] : memref<1x8x8x128xf32, #tpu.memory_space<vmem>>, vector<1x1x8x128xf32>
    %71 = vector.shape_cast %70 : vector<1x1x8x128xf32> to vector<8x128xf32>
    %c6_i32 = arith.constant 6 : i32
    %72 = tpu.dynamic_rotate %41 by %c6_i32 dim 0 : vector<8x128xf32>, i32 -> vector<8x128xf32>
    %73 = arith.mulf %71, %72 : vector<8x128xf32>
    %74 = arith.addf %69, %73 : vector<8x128xf32>
    %c0_32 = arith.constant 0 : index
    %c7 = arith.constant 7 : index
    %c0_33 = arith.constant 0 : index
    %c0_34 = arith.constant 0 : index
    %75 = vector.load %arg5[%c0_32, %c7, %c0_33, %c0_34] : memref<1x8x8x128xf32, #tpu.memory_space<vmem>>, vector<1x1x8x128xf32>
    %76 = vector.shape_cast %75 : vector<1x1x8x128xf32> to vector<8x128xf32>
    %c7_i32 = arith.constant 7 : i32
    %77 = tpu.dynamic_rotate %41 by %c7_i32 dim 0 : vector<8x128xf32>, i32 -> vector<8x128xf32>
    %78 = arith.mulf %76, %77 : vector<8x128xf32>
    %79 = arith.addf %74, %78 : vector<8x128xf32>
    %80 = vector.shape_cast %6 : vector<128xf32> to vector<1x128xf32>
    %81 = vector.broadcast %80 : vector<1x128xf32> to vector<8x128xf32>
    %82 = arith.mulf %41, %81 : vector<8x128xf32>
    %83 = arith.addf %79, %82 : vector<8x128xf32>
    %cst_35 = arith.constant 5.000000e-01 : f32
    %84 = vector.broadcast %cst_35 : f32 to vector<8x128xf32>
    %85 = arith.mulf %84, %83 : vector<8x128xf32>
    %cst_36 = arith.constant 0.707106769 : f32
    %86 = vector.broadcast %cst_36 : f32 to vector<8x128xf32>
    %87 = arith.mulf %83, %86 : vector<8x128xf32>
    %cst_37 = arith.constant 0.000000e+00 : f32
    %88 = vector.broadcast %cst_37 : f32 to vector<8x128xf32>
    %89 = arith.cmpf oge, %87, %88 : vector<8x128xf32>
    %cst_38 = arith.constant 1.000000e+00 : f32
    %cst_39 = arith.constant -1.000000e+00 : f32
    %90 = vector.broadcast %cst_38 : f32 to vector<8x128xf32>
    %91 = vector.broadcast %cst_39 : f32 to vector<8x128xf32>
    %92 = arith.select %89, %90, %91 : vector<8x128xi1>, vector<8x128xf32>
    %93 = arith.mulf %87, %92 : vector<8x128xf32>
    %cst_40 = arith.constant 0.327591091 : f32
    %94 = vector.broadcast %cst_40 : f32 to vector<8x128xf32>
    %95 = arith.mulf %94, %93 : vector<8x128xf32>
    %cst_41 = arith.constant 1.000000e+00 : f32
    %96 = vector.broadcast %cst_41 : f32 to vector<8x128xf32>
    %97 = arith.addf %96, %95 : vector<8x128xf32>
    %98 = tpu.reciprocal %97 {approx = true} : vector<8x128xf32> -> vector<8x128xf32>
    %cst_42 = arith.constant 1.06140542 : f32
    %99 = vector.broadcast %cst_42 : f32 to vector<8x128xf32>
    %100 = arith.mulf %99, %98 : vector<8x128xf32>
    %cst_43 = arith.constant -1.45315206 : f32
    %101 = vector.broadcast %cst_43 : f32 to vector<8x128xf32>
    %102 = arith.addf %100, %101 : vector<8x128xf32>
    %103 = arith.mulf %102, %98 : vector<8x128xf32>
    %cst_44 = arith.constant 1.42141378 : f32
    %104 = vector.broadcast %cst_44 : f32 to vector<8x128xf32>
    %105 = arith.addf %103, %104 : vector<8x128xf32>
    %106 = arith.mulf %105, %98 : vector<8x128xf32>
    %cst_45 = arith.constant -0.284496725 : f32
    %107 = vector.broadcast %cst_45 : f32 to vector<8x128xf32>
    %108 = arith.addf %106, %107 : vector<8x128xf32>
    %109 = arith.mulf %108, %98 : vector<8x128xf32>
    %cst_46 = arith.constant 0.254829586 : f32
    %110 = vector.broadcast %cst_46 : f32 to vector<8x128xf32>
    %111 = arith.addf %109, %110 : vector<8x128xf32>
    %112 = arith.mulf %111, %98 : vector<8x128xf32>
    %cst_47 = arith.constant 0.000000e+00 : f32
    %113 = vector.broadcast %cst_47 : f32 to vector<8x128xf32>
    %114 = arith.subf %113, %93 : vector<8x128xf32>
    %115 = arith.mulf %114, %93 : vector<8x128xf32>
    %116 = math.exp %115 : vector<8x128xf32>
    %117 = arith.mulf %112, %116 : vector<8x128xf32>
    %cst_48 = arith.constant 1.000000e+00 : f32
    %118 = vector.broadcast %cst_48 : f32 to vector<8x128xf32>
    %119 = arith.subf %118, %117 : vector<8x128xf32>
    %120 = arith.mulf %92, %119 : vector<8x128xf32>
    %cst_49 = arith.constant 1.000000e+00 : f32
    %121 = vector.broadcast %cst_49 : f32 to vector<8x128xf32>
    %122 = arith.addf %121, %120 : vector<8x128xf32>
    %123 = arith.mulf %85, %122 : vector<8x128xf32>
    %124 = arith.truncf %123 : vector<8x128xf32> to vector<8x128xbf16>
    %c0_50 = arith.constant 0 : index
    %c0_51 = arith.constant 0 : index
    %c0_52 = arith.constant 0 : index
    %125 = vector.load %arg7[%c0_50, %c0_51, %c0_52] : memref<1x128x256xbf16, #tpu.memory_space<vmem>>, vector<1x128x256xbf16>
    %126 = vector.shape_cast %125 : vector<1x128x256xbf16> to vector<128x256xbf16>
    %cst_53 = arith.constant dense<0.000000e+00> : vector<8x256xf32>
    %127 = tpu.matmul %124, %126, %cst_53 {dimension_numbers = #tpu.dot_dimension_numbers<[1], [0], [0], [1], [0, 0, 1, 1], [], []>} : vector<8x128xbf16>, vector<128x256xbf16>, vector<8x256xf32> -> vector<8x256xf32>
    %128 = vector.extract_strided_slice %127 {offsets = [0, 0], sizes = [8, 128], strides = [1, 1]} : vector<8x256xf32> to vector<8x128xf32>
    %129 = vector.shape_cast %12 : vector<128xf32> to vector<1x128xf32>
    %130 = vector.broadcast %129 : vector<1x128xf32> to vector<8x128xf32>
    %131 = arith.addf %128, %130 : vector<8x128xf32>
    %132 = vector.extract_strided_slice %127 {offsets = [0, 128], sizes = [8, 128], strides = [1, 1]} : vector<8x256xf32> to vector<8x128xf32>
    %133 = vector.shape_cast %14 : vector<128xf32> to vector<1x128xf32>
    %134 = vector.broadcast %133 : vector<1x128xf32> to vector<8x128xf32>
    %135 = arith.addf %132, %134 : vector<8x128xf32>
    %136 = arith.negf %135 : vector<8x128xf32>
    %137 = math.exp %136 : vector<8x128xf32>
    %cst_54 = arith.constant 1.000000e+00 : f32
    %138 = vector.broadcast %cst_54 : f32 to vector<8x128xf32>
    %139 = arith.addf %138, %137 : vector<8x128xf32>
    %140 = arith.divf %138, %139 : vector<8x128xf32>
    %141 = arith.mulf %131, %140 : vector<8x128xf32>
    %142 = arith.addf %141, %15 : vector<8x128xf32>
    %c0_55 = arith.constant 0 : index
    %c0_56 = arith.constant 0 : index
    %143 = vector.load %arg11[%c0_55, %c0_56] : memref<8x128xf32, #tpu.memory_space<vmem>>, vector<8x128xf32>
    tpu.vector_store %arg11[%c0_55, %c0_56], %142 {strides = array<i32>} : memref<8x128xf32, #tpu.memory_space<vmem>>, vector<8x128xf32>,
    %c1_i32_57 = arith.constant 1 : i32
    %144 = arith.cmpi eq, %arg1, %c1_i32_57 : i32
    %145 = arith.extui %144 : i1 to i32
    %c0_i32_58 = arith.constant 0 : i32
    %146 = arith.cmpi ne, %145, %c0_i32_58 : i32
    scf.if %146 {
      %147 = arith.truncf %142 : vector<8x128xf32> to vector<8x128xbf16>
      %c0_59 = arith.constant 0 : index
      %c0_60 = arith.constant 0 : index
      %148 = vector.load %arg8[%c0_59, %c0_60] : memref<128x128xbf16, #tpu.memory_space<vmem>>, vector<128x128xbf16>
      %cst_61 = arith.constant dense<0.000000e+00> : vector<8x128xf32>
      %149 = tpu.matmul %147, %148, %cst_61 {dimension_numbers = #tpu.dot_dimension_numbers<[1], [0], [0], [1], [0, 0, 1, 1], [], []>} : vector<8x128xbf16>, vector<128x128xbf16>, vector<8x128xf32> -> vector<8x128xf32>
      %c0_62 = arith.constant 0 : index
      %c0_63 = arith.constant 0 : index
      %150 = vector.load %arg9[%c0_62, %c0_63] : memref<1x128xf32, #tpu.memory_space<vmem>>, vector<1x128xf32>
      %151 = vector.shape_cast %150 : vector<1x128xf32> to vector<128xf32>
      %152 = vector.shape_cast %151 : vector<128xf32> to vector<1x128xf32>
      %153 = vector.broadcast %152 : vector<1x128xf32> to vector<8x128xf32>
      %154 = arith.addf %149, %153 : vector<8x128xf32>
      %c0_64 = arith.constant 0 : index
      %c0_65 = arith.constant 0 : index
      %c0_66 = arith.constant 0 : index
      %155 = vector.load %arg10[%c0_64, %c0_65, %c0_66] : memref<1x8x128xf32, #tpu.memory_space<vmem>>, vector<1x8x128xf32>
      %156 = vector.shape_cast %155 : vector<1x8x128xf32> to vector<8x128xf32>
      %157 = vector.shape_cast %154 : vector<8x128xf32> to vector<1x8x128xf32>
      tpu.vector_store %arg10[%c0_64, %c0_65, %c0_66], %157 {strides = array<i32>} : memref<1x8x128xf32, #tpu.memory_space<vmem>>, vector<1x8x128xf32>,
    } else {
    }
    return
  }
  func.func @transform_0(%arg0: i32, %arg1: i32) -> (i32, i32, i32) {
    %c0_i32 = arith.constant 0 : i32
    %c0_i32_0 = arith.constant 0 : i32
    %c0_i32_1 = arith.constant 0 : i32
    return %arg0, %c0_i32, %c0_i32_0 : i32, i32, i32
  }
  func.func @transform_1(%arg0: i32, %arg1: i32) -> (i32, i32) {
    %c0_i32 = arith.constant 0 : i32
    %c0_i32_0 = arith.constant 0 : i32
    %c0_i32_1 = arith.constant 0 : i32
    return %c0_i32, %c0_i32_0 : i32, i32
  }
  func.func @transform_2(%arg0: i32, %arg1: i32) -> (i32, i32) {
    %c0_i32 = arith.constant 0 : i32
    %c0_i32_0 = arith.constant 0 : i32
    %c0_i32_1 = arith.constant 0 : i32
    return %c0_i32, %c0_i32_0 : i32, i32
  }
  func.func @transform_3(%arg0: i32, %arg1: i32) -> (i32, i32, i32, i32) {
    %c0_i32 = arith.constant 0 : i32
    %c0_i32_0 = arith.constant 0 : i32
    %c0_i32_1 = arith.constant 0 : i32
    %c0_i32_2 = arith.constant 0 : i32
    return %arg1, %c0_i32, %c0_i32_0, %c0_i32_1 : i32, i32, i32, i32
  }
  func.func @transform_4(%arg0: i32, %arg1: i32) -> (i32, i32, i32) {
    %c0_i32 = arith.constant 0 : i32
    %c0_i32_0 = arith.constant 0 : i32
    %c0_i32_1 = arith.constant 0 : i32
    return %arg1, %c0_i32, %c0_i32_0 : i32, i32, i32
  }
  func.func @transform_5(%arg0: i32, %arg1: i32) -> (i32, i32, i32) {
    %c0_i32 = arith.constant 0 : i32
    %c0_i32_0 = arith.constant 0 : i32
    %c0_i32_1 = arith.constant 0 : i32
    return %arg1, %c0_i32, %c0_i32_0 : i32, i32, i32
  }
  func.func @transform_6(%arg0: i32, %arg1: i32) -> (i32, i32) {
    %c0_i32 = arith.constant 0 : i32
    %c0_i32_0 = arith.constant 0 : i32
    %c0_i32_1 = arith.constant 0 : i32
    return %c0_i32, %c0_i32_0 : i32, i32
  }
  func.func @transform_7(%arg0: i32, %arg1: i32) -> (i32, i32) {
    %c0_i32 = arith.constant 0 : i32
    %c0_i32_0 = arith.constant 0 : i32
    %c0_i32_1 = arith.constant 0 : i32
    return %c0_i32, %c0_i32_0 : i32, i32
  }
  func.func @transform_8(%arg0: i32, %arg1: i32) -> (i32, i32, i32) {
    %c0_i32 = arith.constant 0 : i32
    %c0_i32_0 = arith.constant 0 : i32
    %c0_i32_1 = arith.constant 0 : i32
    return %arg0, %c0_i32, %c0_i32_0 : i32, i32, i32
  }
}

</mosaic_0001>

<llo_original>
// kernel: tpu_custom_call.1
$region0: #{tpu_custom_call.1}
  #allocation0 [shape = 'u32[]', space=smem, size = 0x4, offset = 0x4, fixed_abs, tag = 'smem constant byte address 0x4 - core index']
  #allocation1 [shape = 'u32[144,128]{1,0:T(1,128)}', space=vmem, size = 0x12000, scoped, tag = 'internal scratch']
  #allocation2 [shape = 'f32[8,128]{1,0:T(8,128)}', space=vmem, size = 0x1000, scoped, tag = 'scratch operand']
  %s0 = inlined_call_operand.hbm [shape: f32[2,8,128], index: 0, kind: input, shape index: {}]
  %s1 = inlined_call_operand.hbm [shape: bf16[128,128], index: 1, kind: input, shape index: {}]
  %s2 = inlined_call_operand.vmem [shape: f32[1,128], index: 2, kind: input, shape index: {}]
  %s3 = inlined_call_operand.hbm [shape: f32[2,8,8,128], index: 3, kind: input, shape index: {}]
  %s4 = inlined_call_operand.hbm [shape: f32[2,8,128], index: 4, kind: input, shape index: {}]
  %s5 = inlined_call_operand.hbm [shape: bf16[2,128,256], index: 5, kind: input, shape index: {}]
  %s6 = inlined_call_operand.hbm [shape: bf16[128,128], index: 6, kind: input, shape index: {}]
  %s7 = inlined_call_operand.vmem [shape: f32[1,128], index: 7, kind: input, shape index: {}]
  %s8 = inlined_call_operand.hbm [shape: f32[2,8,128], index: 8, kind: output, shape index: {}]
  %s9 = sld [smem:[#allocation0]]
  $region97: #{tpu_custom_call.1} parent=0
    _
  %s11 = ssub.s32 1, %s9
  %s12 = scalar_select 0, %s11, %s9
  $region1: #{tpu_custom_call.1} parent=0
    #allocation3 [shape = 'u8[8192]{0}', space=vmem, size = 0x2000, scoped, tag = 'input window, operand 0']
    #allocation4 [shape = 's32[2]{0}', space=sflag, size = 0x8, scoped, tag = 'scoped memory for tpu_custom_call.1']
    #allocation5 [shape = 's32[2]{0}', space=sflag, size = 0x8, scoped, tag = 'scoped memory for tpu_custom_call.1']
    #allocation6 [shape = 'u8[32768]{0}', space=vmem, size = 0x8000, scoped, tag = 'input window, operand 1, single buffered']
    #allocation7 [shape = 's32[1]{0}', space=sflag, size = 0x4, scoped, tag = 'scoped memory for tpu_custom_call.1']
    #allocation8 [shape = 'u8[65536]{0}', space=vmem, size = 0x10000, scoped, tag = 'input window, operand 3']
    #allocation9 [shape = 'u8[8192]{0}', space=vmem, size = 0x2000, scoped, tag = 'input window, operand 4']
    #allocation10 [shape = 'u8[131072]{0}', space=vmem, size = 0x20000, scoped, tag = 'input window, operand 5']
    #allocation11 [shape = 'u8[32768]{0}', space=vmem, size = 0x8000, scoped, tag = 'input window, operand 6, single buffered']
    #allocation12 [shape = 'u8[8192]{0}', space=vmem, size = 0x2000, scoped, tag = 'output window, operand 0']
    %13 = vsyncpa [#allocation4], 0
    %s14 = scalar_lea.sflag [#allocation4], 1
    %15 = vsyncpa %s14, 0
    %16 = vsyncpa [#allocation7], 0
    %17 = vsyncpa [#allocation5], 0
    %s18 = scalar_lea.sflag [#allocation5], 1
    %19 = vsyncpa %s18, 0
    loop: start=0, step=1, limit=6
    $region2: #{tpu_custom_call.1} parent=1 // loop_pre_header
      _
    $region3: #{tpu_custom_call.1} parent=1 // loop_header
      %s21 = sphi 0, %s25
      %p22 = scmp.ge.s32.totalorder %s21, 6
      %s28 = sphi 0, %s40
      %s29 = sphi 0, %s36
      %s30 = sphi 0, %s28
      %s31 = sphi 0, %s29
      %s32 = sphi 0, %s30
      %s33 = sphi 0, %s31
      %s43 = sphi 0, %s45
      %s46 = sphi 0, %s43
      %s47 = sphi 0, %s46
      %s63 = sphi 0, %s47
      %s67 = sphi 0, %s67
      %s69 = sphi 0, %s67
      %s70 = sphi 0, %s69
      %s84 = sphi 0, %s70
      %s88 = sphi 0, %s88
      %s90 = sphi 0, %s88
      %s91 = sphi 0, %s90
      %s105 = sphi 0, %s91
      %s111 = sphi 0, %s113
      %s114 = sphi 0, %s111
      %s115 = sphi 0, %s114
      %s131 = sphi 0, %s115
      %s137 = sphi 0, %s139
      %s140 = sphi 0, %s137
      %s141 = sphi 0, %s140
      %s157 = sphi 0, %s141
      %s163 = sphi 0, %s165
      %s166 = sphi 0, %s163
      %s167 = sphi 0, %s166
      %s183 = sphi 0, %s167
      %s187 = sphi 0, %s187
      %s189 = sphi 0, %s187
      %s190 = sphi 0, %s189
      %s204 = sphi 0, %s190
      %s208 = sphi 0, %s208
      %s210 = sphi 0, %s208
      %s211 = sphi 0, %s210
      %s225 = sphi 0, %s211
      %s231 = sphi 0, %s233
      %s234 = sphi 0, %s231
      %s235 = sphi 0, %s234
      %s251 = sphi 0, %s235
    $region4: #{tpu_custom_call.1} parent=1 // loop_header_branch
      %24 = sbr.rel (%p22) target = $region8
    $region5: #{tpu_custom_call.1} parent=1 // loop_body
      %s26 = ssub.s32 %s21, 1
      %s27 = ssub.s32 %s21, 2
      %s34 = sadd.s32 1, %s29
      %p35 = scmp.ge.s32.totalorder %s34, 2
      %s36 = scalar_select %p35, 0, %s34
      %s37 = sadd.s32 1, %s28
      %s38 = scalar_select %p35, %s37, %s28
      %p39 = scmp.ge.s32.totalorder %s38, 2
      %s40 = scalar_select %p39, 0, %s38
      %s41 = ssub.s32 %s28, %s40
      %p42 = scmp.eq.s32.totalorder %s41, 0
      %s44 = sadd.s32 %s43, 1
      %s45 = scalar_select %p42, %s43, %s44
      %p48 = pneg %p42
      %p49 = scmp.eq.s32.totalorder %s21, 3
      %p50 = por %p48, %p49
      %p51 = scmp.ne.s32.totalorder %s43, %s46
      %p52 = scmp.eq.s32.totalorder %s21, 0
      %p53 = por %p51, %p52
      %p54 = scmp.ne.s32.totalorder %s43, %s46
      %p55 = scmp.eq.s32.totalorder %s26, 3
      %p56 = por %p54, %p55
      %p57 = scmp.ne.s32.totalorder %s46, %s47
      %p58 = scmp.eq.s32.totalorder %s26, 0
      %p59 = por %p57, %p58
      %p60 = scmp.ne.s32.totalorder %s46, %s47
      %p61 = scmp.eq.s32.totalorder %s27, 3
      %p62 = por %p60, %p61
      %p64 = scmp.ne.s32.totalorder %s47, %s63
      %p65 = scmp.eq.s32.totalorder %s27, 0
      %p66 = por %p64, %p65
      %s68 = sadd.s32 %s67, 1
      %p71 = scmp.eq.s32.totalorder %s21, 3
      %p72 = scmp.ne.s32.totalorder %s67, %s69
      %p73 = scmp.eq.s32.totalorder %s21, 0
      %p74 = por %p72, %p73
      %p75 = scmp.ne.s32.totalorder %s67, %s69
      %p76 = scmp.eq.s32.totalorder %s26, 3
      %p77 = por %p75, %p76
      %p78 = scmp.ne.s32.totalorder %s69, %s70
      %p79 = scmp.eq.s32.totalorder %s26, 0
      %p80 = por %p78, %p79
      %p81 = scmp.ne.s32.totalorder %s69, %s70
      %p82 = scmp.eq.s32.totalorder %s27, 3
      %p83 = por %p81, %p82
      %p85 = scmp.ne.s32.totalorder %s70, %s84
      %p86 = scmp.eq.s32.totalorder %s27, 0
      %p87 = por %p85, %p86
      %s89 = sadd.s32 %s88, 1
      %p92 = scmp.eq.s32.totalorder %s21, 3
      %p93 = scmp.ne.s32.totalorder %s88, %s90
      %p94 = scmp.eq.s32.totalorder %s21, 0
      %p95 = por %p93, %p94
      %p96 = scmp.ne.s32.totalorder %s88, %s90
      %p97 = scmp.eq.s32.totalorder %s26, 3
      %p98 = por %p96, %p97
      %p99 = scmp.ne.s32.totalorder %s90, %s91
      %p100 = scmp.eq.s32.totalorder %s26, 0
      %p101 = por %p99, %p100
      %p102 = scmp.ne.s32.totalorder %s90, %s91
      %p103 = scmp.eq.s32.totalorder %s27, 3
      %p104 = por %p102, %p103
      %p106 = scmp.ne.s32.totalorder %s91, %s105
      %p107 = scmp.eq.s32.totalorder %s27, 0
      %p108 = por %p106, %p107
      %s109 = ssub.s32 %s29, %s36
      %p110 = scmp.eq.s32.totalorder %s109, 0
      %s112 = sadd.s32 %s111, 1
      %s113 = scalar_select %p110, %s111, %s112
      %p116 = pneg %p110
      %p117 = scmp.eq.s32.totalorder %s21, 3
      %p118 = por %p116, %p117
      %p119 = scmp.ne.s32.totalorder %s111, %s114
      %p120 = scmp.eq.s32.totalorder %s21, 0
      %p121 = por %p119, %p120
      %p122 = scmp.ne.s32.totalorder %s111, %s114
      %p123 = scmp.eq.s32.totalorder %s26, 3
      %p124 = por %p122, %p123
      %p125 = scmp.ne.s32.totalorder %s114, %s115
      %p126 = scmp.eq.s32.totalorder %s26, 0
      %p127 = por %p125, %p126
      %p128 = scmp.ne.s32.totalorder %s114, %s115
      %p129 = scmp.eq.s32.totalorder %s27, 3
      %p130 = por %p128, %p129
      %p132 = scmp.ne.s32.totalorder %s115, %s131
      %p133 = scmp.eq.s32.totalorder %s27, 0
      %p134 = por %p132, %p133
      %s135 = ssub.s32 %s29, %s36
      %p136 = scmp.eq.s32.totalorder %s135, 0
      %s138 = sadd.s32 %s137, 1
      %s139 = scalar_select %p136, %s137, %s138
      %p142 = pneg %p136
      %p143 = scmp.eq.s32.totalorder %s21, 3
      %p144 = por %p142, %p143
      %p145 = scmp.ne.s32.totalorder %s137, %s140
      %p146 = scmp.eq.s32.totalorder %s21, 0
      %p147 = por %p145, %p146
      %p148 = scmp.ne.s32.totalorder %s137, %s140
      %p149 = scmp.eq.s32.totalorder %s26, 3
      %p150 = por %p148, %p149
      %p151 = scmp.ne.s32.totalorder %s140, %s141
      %p152 = scmp.eq.s32.totalorder %s26, 0
      %p153 = por %p151, %p152
      %p154 = scmp.ne.s32.totalorder %s140, %s141
      %p155 = scmp.eq.s32.totalorder %s27, 3
      %p156 = por %p154, %p155
      %p158 = scmp.ne.s32.totalorder %s141, %s157
      %p159 = scmp.eq.s32.totalorder %s27, 0
      %p160 = por %p158, %p159
      %s161 = ssub.s32 %s29, %s36
      %p162 = scmp.eq.s32.totalorder %s161, 0
      %s164 = sadd.s32 %s163, 1
      %s165 = scalar_select %p162, %s163, %s164
      %p168 = pneg %p162
      %p169 = scmp.eq.s32.totalorder %s21, 3
      %p170 = por %p168, %p169
      %p171 = scmp.ne.s32.totalorder %s163, %s166
      %p172 = scmp.eq.s32.totalorder %s21, 0
      %p173 = por %p171, %p172
      %p174 = scmp.ne.s32.totalorder %s163, %s166
      %p175 = scmp.eq.s32.totalorder %s26, 3
      %p176 = por %p174, %p175
      %p177 = scmp.ne.s32.totalorder %s166, %s167
      %p178 = scmp.eq.s32.totalorder %s26, 0
      %p179 = por %p177, %p178
      %p180 = scmp.ne.s32.totalorder %s166, %s167
      %p181 = scmp.eq.s32.totalorder %s27, 3
      %p182 = por %p180, %p181
      %p184 = scmp.ne.s32.totalorder %s167, %s183
      %p185 = scmp.eq.s32.totalorder %s27, 0
      %p186 = por %p184, %p185
      %s188 = sadd.s32 %s187, 1
      %p191 = scmp.eq.s32.totalorder %s21, 3
      %p192 = scmp.ne.s32.totalorder %s187, %s189
      %p193 = scmp.eq.s32.totalorder %s21, 0
      %p194 = por %p192, %p193
      %p195 = scmp.ne.s32.totalorder %s187, %s189
      %p196 = scmp.eq.s32.totalorder %s26, 3
      %p197 = por %p195, %p196
      %p198 = scmp.ne.s32.totalorder %s189, %s190
      %p199 = scmp.eq.s32.totalorder %s26, 0
      %p200 = por %p198, %p199
      %p201 = scmp.ne.s32.totalorder %s189, %s190
      %p202 = scmp.eq.s32.totalorder %s27, 3
      %p203 = por %p201, %p202
      %p205 = scmp.ne.s32.totalorder %s190, %s204
      %p206 = scmp.eq.s32.totalorder %s27, 0
      %p207 = por %p205, %p206
      %s209 = sadd.s32 %s208, 1
      %p212 = scmp.eq.s32.totalorder %s21, 3
      %p213 = scmp.ne.s32.totalorder %s208, %s210
      %p214 = scmp.eq.s32.totalorder %s21, 0
      %p215 = por %p213, %p214
      %p216 = scmp.ne.s32.totalorder %s208, %s210
      %p217 = scmp.eq.s32.totalorder %s26, 3
      %p218 = por %p216, %p217
      %p219 = scmp.ne.s32.totalorder %s210, %s211
      %p220 = scmp.eq.s32.totalorder %s26, 0
      %p221 = por %p219, %p220
      %p222 = scmp.ne.s32.totalorder %s210, %s211
      %p223 = scmp.eq.s32.totalorder %s27, 3
      %p224 = por %p222, %p223
      %p226 = scmp.ne.s32.totalorder %s211, %s225
      %p227 = scmp.eq.s32.totalorder %s27, 0
      %p228 = por %p226, %p227
      %s229 = ssub.s32 %s28, %s40
      %p230 = scmp.eq.s32.totalorder %s229, 0
      %s232 = sadd.s32 %s231, 1
      %s233 = scalar_select %p230, %s231, %s232
      %p236 = pneg %p230
      %p237 = scmp.eq.s32.totalorder %s21, 3
      %p238 = por %p236, %p237
      %p239 = scmp.ne.s32.totalorder %s231, %s234
      %p240 = scmp.eq.s32.totalorder %s21, 0
      %p241 = por %p239, %p240
      %p242 = scmp.ne.s32.totalorder %s231, %s234
      %p243 = scmp.eq.s32.totalorder %s26, 3
      %p244 = por %p242, %p243
      %p245 = scmp.ne.s32.totalorder %s234, %s235
      %p246 = scmp.eq.s32.totalorder %s26, 0
      %p247 = por %p245, %p246
      %p248 = scmp.ne.s32.totalorder %s234, %s235
      %p249 = scmp.eq.s32.totalorder %s27, 3
      %p250 = por %p248, %p249
      %p252 = scmp.ne.s32.totalorder %s235, %s251
      %p253 = scmp.eq.s32.totalorder %s27, 0
      %p254 = por %p252, %p253
      %p255 = scmp.le.s32.totalorder 1, %s21
      %p256 = scmp.lt.s32.totalorder %s21, 5
      %p257 = pnand %p255, %p256
      %p258 = pneg %p257
      // Predicated region
      $region9: #{tpu_custom_call.1} parent=5 // pred_check
        _
      $region10: #{tpu_custom_call.1} parent=5 // pred_check_branch
        %260 = sbr.rel (%p257) target = $region12
      $region11: #{tpu_custom_call.1} parent=5 // pred_region
        %s261 = ssub.s32 %s21, 1
        // Predicated region
        $region13: #{tpu_custom_call.1} parent=11 // pred_check
          %p262 = pneg %p80
        $region14: #{tpu_custom_call.1} parent=11 // pred_check_branch
          %264 = sbr.rel (%p262) target = $region16
        $region15: #{tpu_custom_call.1} parent=11 // pred_region
          %s266 = ssub.s32 1024, 1024
          %267 = vsyncadd [#allocation7], %s266
          %s268 = sshll.u32 [#allocation6], 4
          %s269 = int_to_ptr.vmem [resolvable:$true] %s268
          %274 = dma.hbm_to_vmem [thread:$0]  %s1, 1024, %s269, [#allocation7], 64, 64, 4
        $region16: #{tpu_custom_call.1} parent=11 // pred_fallthru
          _
        // Predicated region
        $region17: #{tpu_custom_call.1} parent=11 // pred_check
          %p275 = pneg %p101
        $region18: #{tpu_custom_call.1} parent=11 // pred_check_branch
          %277 = sbr.rel (%p275) target = $region20
        $region19: #{tpu_custom_call.1} parent=11 // pred_region
          _
        $region20: #{tpu_custom_call.1} parent=11 // pred_fallthru
          _
        // Predicated region
        $region21: #{tpu_custom_call.1} parent=11 // pred_check
          %p278 = pneg %p200
        $region22: #{tpu_custom_call.1} parent=11 // pred_check_branch
          %280 = sbr.rel (%p278) target = $region24
        $region23: #{tpu_custom_call.1} parent=11 // pred_region
          %s282 = ssub.s32 1024, 1024
          %283 = vsyncadd [#allocation7], %s282
          %s284 = sshll.u32 [#allocation11], 4
          %s285 = int_to_ptr.vmem [resolvable:$true] %s284
          %290 = dma.hbm_to_vmem [thread:$0]  %s6, 1024, %s285, [#allocation7], 64, 64, 4
        $region24: #{tpu_custom_call.1} parent=11 // pred_fallthru
          _
        // Predicated region
        $region25: #{tpu_custom_call.1} parent=11 // pred_check
          %p291 = pneg %p221
        $region26: #{tpu_custom_call.1} parent=11 // pred_check_branch
          %293 = sbr.rel (%p291) target = $region28
        $region27: #{tpu_custom_call.1} parent=11 // pred_region
          _
        $region28: #{tpu_custom_call.1} parent=11 // pred_fallthru
          _
      $region12: #{tpu_custom_call.1} parent=5 // pred_fallthru
        _
      %p294 = scmp.lt.s32.totalorder %s21, 4
      // Predicated region
      $region29: #{tpu_custom_call.1} parent=5 // pred_check
        %p295 = pneg %p294
      $region30: #{tpu_custom_call.1} parent=5 // pred_check_branch
        %297 = sbr.rel (%p295) target = $region32
      $region31: #{tpu_custom_call.1} parent=5 // pred_region
        // Predicated region
        $region33: #{tpu_custom_call.1} parent=31 // pred_check
          %p298 = pneg %p53
        $region34: #{tpu_custom_call.1} parent=31 // pred_check_branch
          %300 = sbr.rel (%p298) target = $region36
        $region35: #{tpu_custom_call.1} parent=31 // pred_region
          %s301 = sand.u32 %s21, 1
          %s302 = scalar_lea.sflag [#allocation4], %s301
          %s303 = sand.u32 %s43, 1
          %s304 = smul.addr %s303, 8
          %s305 = scalar_lea.vmem [#allocation3], %s304
          %s307 = ssub.s32 128, 128
          %308 = vsyncadd %s302, %s307
          %s309 = smul.addr %s28, 128
          %s310 = scalar_lea.hbm %s0, %s309
          %s312 = sshll.u32 %s305, 4
          %s313 = int_to_ptr.vmem [resolvable:$true] %s312
          %315 = dma.hbm_to_vmem [thread:$0]  %s310, 128, %s313, %s302
        $region36: #{tpu_custom_call.1} parent=31 // pred_fallthru
          _
        // Predicated region
        $region37: #{tpu_custom_call.1} parent=31 // pred_check
          %p316 = pneg %p121
        $region38: #{tpu_custom_call.1} parent=31 // pred_check_branch
          %318 = sbr.rel (%p316) target = $region40
        $region39: #{tpu_custom_call.1} parent=31 // pred_region
          %s319 = sand.u32 %s21, 1
          %s320 = scalar_lea.sflag [#allocation4], %s319
          %s321 = sand.u32 %s111, 1
          %s322 = smul.addr %s321, 64
          %s323 = scalar_lea.vmem [#allocation8], %s322
          %s325 = ssub.s32 1024, 1024
          %326 = vsyncadd %s320, %s325
          %s327 = smul.addr %s29, 8
          %s328 = smul.addr %s327, 128
          %s329 = scalar_lea.hbm %s3, %s328
          %s330 = sshll.u32 %s323, 4
          %s331 = int_to_ptr.vmem [resolvable:$true] %s330
          %336 = dma.hbm_to_vmem [thread:$0]  %s329, 1024, %s331, %s320, 128, 128, 8
        $region40: #{tpu_custom_call.1} parent=31 // pred_fallthru
          _
        // Predicated region
        $region41: #{tpu_custom_call.1} parent=31 // pred_check
          %p337 = pneg %p147
        $region42: #{tpu_custom_call.1} parent=31 // pred_check_branch
          %339 = sbr.rel (%p337) target = $region44
        $region43: #{tpu_custom_call.1} parent=31 // pred_region
          %s340 = sand.u32 %s21, 1
          %s341 = scalar_lea.sflag [#allocation4], %s340
          %s342 = sand.u32 %s137, 1
          %s343 = smul.addr %s342, 8
          %s344 = scalar_lea.vmem [#allocation9], %s343
          %s346 = ssub.s32 128, 128
          %347 = vsyncadd %s341, %s346
          %s348 = smul.addr %s29, 128
          %s349 = scalar_lea.hbm %s4, %s348
          %s351 = sshll.u32 %s344, 4
          %s352 = int_to_ptr.vmem [resolvable:$true] %s351
          %354 = dma.hbm_to_vmem [thread:$0]  %s349, 128, %s352, %s341
        $region44: #{tpu_custom_call.1} parent=31 // pred_fallthru
          _
        // Predicated region
        $region45: #{tpu_custom_call.1} parent=31 // pred_check
          %p355 = pneg %p173
        $region46: #{tpu_custom_call.1} parent=31 // pred_check_branch
          %357 = sbr.rel (%p355) target = $region48
        $region47: #{tpu_custom_call.1} parent=31 // pred_region
          %s358 = sand.u32 %s21, 1
          %s359 = scalar_lea.sflag [#allocation4], %s358
          %s360 = sand.u32 %s163, 1
          %s361 = smul.addr %s360, 128
          %s362 = scalar_lea.vmem [#allocation10], %s361
          %s364 = ssub.s32 2048, 2048
          %365 = vsyncadd %s359, %s364
          %s366 = smul.addr %s29, 32
          %s367 = smul.addr %s366, 64
          %s368 = scalar_lea.hbm %s5, %s367
          %s369 = sshll.u32 %s362, 4
          %s370 = int_to_ptr.vmem [resolvable:$true] %s369
          %375 = dma.hbm_to_vmem [thread:$0]  %s368, 2048, %s370, %s359, 128, 128, 8
        $region48: #{tpu_custom_call.1} parent=31 // pred_fallthru
          _
      $region32: #{tpu_custom_call.1} parent=5 // pred_fallthru
        _
      %p376 = scmp.le.s32.totalorder 1, %s21
      %p377 = scmp.lt.s32.totalorder %s21, 5
      %p378 = pnand %p376, %p377
      %p379 = pneg %p378
      // Predicated region
      $region49: #{tpu_custom_call.1} parent=5 // pred_check
        _
      $region50: #{tpu_custom_call.1} parent=5 // pred_check_branch
        %381 = sbr.rel (%p378) target = $region52
      $region51: #{tpu_custom_call.1} parent=5 // pred_region
        %s382 = ssub.s32 %s21, 1
        %s383 = sand.u32 %s26, 1
        %s384 = scalar_lea.sflag [#allocation4], %s383
        %s385 = sand.u32 %s46, 1
        %s386 = smul.addr %s385, 8
        %s387 = scalar_lea.vmem [#allocation3], %s386
        // Predicated region
        $region53: #{tpu_custom_call.1} parent=51 // pred_check
          %p388 = pneg %p59
        $region54: #{tpu_custom_call.1} parent=51 // pred_check_branch
          %390 = sbr.rel (%p388) target = $region56
        $region55: #{tpu_custom_call.1} parent=51 // pred_region
          %391 = dma.done %s384, 128
        $region56: #{tpu_custom_call.1} parent=51 // pred_fallthru
          _
        // Predicated region
        $region57: #{tpu_custom_call.1} parent=51 // pred_check
          %p392 = pneg %p80
        $region58: #{tpu_custom_call.1} parent=51 // pred_check_branch
          %394 = sbr.rel (%p392) target = $region60
        $region59: #{tpu_custom_call.1} parent=51 // pred_region
          %395 = dma.done [#allocation7], 1024
        $region60: #{tpu_custom_call.1} parent=51 // pred_fallthru
          _
        %s396 = sand.u32 %s26, 1
        %s397 = scalar_lea.sflag [#allocation4], %s396
        %s398 = sand.u32 %s114, 1
        %s399 = smul.addr %s398, 64
        %s400 = scalar_lea.vmem [#allocation8], %s399
        // Predicated region
        $region61: #{tpu_custom_call.1} parent=51 // pred_check
          %p401 = pneg %p127
        $region62: #{tpu_custom_call.1} parent=51 // pred_check_branch
          %403 = sbr.rel (%p401) target = $region64
        $region63: #{tpu_custom_call.1} parent=51 // pred_region
          %404 = dma.done %s397, 1024
        $region64: #{tpu_custom_call.1} parent=51 // pred_fallthru
          _
        %s405 = sand.u32 %s26, 1
        %s406 = scalar_lea.sflag [#allocation4], %s405
        %s407 = sand.u32 %s140, 1
        %s408 = smul.addr %s407, 8
        %s409 = scalar_lea.vmem [#allocation9], %s408
        // Predicated region
        $region65: #{tpu_custom_call.1} parent=51 // pred_check
          %p410 = pneg %p153
        $region66: #{tpu_custom_call.1} parent=51 // pred_check_branch
          %412 = sbr.rel (%p410) target = $region68
        $region67: #{tpu_custom_call.1} parent=51 // pred_region
          %413 = dma.done %s406, 128
        $region68: #{tpu_custom_call.1} parent=51 // pred_fallthru
          _
        %s414 = sand.u32 %s26, 1
        %s415 = scalar_lea.sflag [#allocation4], %s414
        %s416 = sand.u32 %s166, 1
        %s417 = smul.addr %s416, 128
        %s418 = scalar_lea.vmem [#allocation10], %s417
        // Predicated region
        $region69: #{tpu_custom_call.1} parent=51 // pred_check
          %p419 = pneg %p179
        $region70: #{tpu_custom_call.1} parent=51 // pred_check_branch
          %421 = sbr.rel (%p419) target = $region72
        $region71: #{tpu_custom_call.1} parent=51 // pred_region
          %422 = dma.done %s415, 2048
        $region72: #{tpu_custom_call.1} parent=51 // pred_fallthru
          _
        // Predicated region
        $region73: #{tpu_custom_call.1} parent=51 // pred_check
          %p423 = pneg %p200
        $region74: #{tpu_custom_call.1} parent=51 // pred_check_branch
          %425 = sbr.rel (%p423) target = $region76
        $region75: #{tpu_custom_call.1} parent=51 // pred_region
          %426 = dma.done [#allocation7], 1024
        $region76: #{tpu_custom_call.1} parent=51 // pred_fallthru
          _
        %s427 = sand.u32 %s26, 1
        %s428 = scalar_lea.sflag [#allocation4], %s427
        %s429 = sand.u32 %s46, 1
        %s430 = smul.addr %s429, 8
        %s431 = scalar_lea.vmem [#allocation3], %s430
        %p432 = pneg %p59
        %p433 = pneg %p56
        %p434 = pneg %p80
        %p435 = pneg %p77
        %p436 = pneg %p101
        %p437 = pneg %p98
        %s438 = sand.u32 %s26, 1
        %s439 = scalar_lea.sflag [#allocation4], %s438
        %s440 = sand.u32 %s114, 1
        %s441 = smul.addr %s440, 64
        %s442 = scalar_lea.vmem [#allocation8], %s441
        %p443 = pneg %p127
        %p444 = pneg %p124
        %s445 = sand.u32 %s26, 1
        %s446 = scalar_lea.sflag [#allocation4], %s445
        %s447 = sand.u32 %s140, 1
        %s448 = smul.addr %s447, 8
        %s449 = scalar_lea.vmem [#allocation9], %s448
        %p450 = pneg %p153
        %p451 = pneg %p150
        %s452 = sand.u32 %s26, 1
        %s453 = scalar_lea.sflag [#allocation4], %s452
        %s454 = sand.u32 %s166, 1
        %s455 = smul.addr %s454, 128
        %s456 = scalar_lea.vmem [#allocation10], %s455
        %p457 = pneg %p179
        %p458 = pneg %p176
        %p459 = pneg %p200
        %p460 = pneg %p197
        %p461 = pneg %p221
        %p462 = pneg %p218
        %p463 = pneg %p247
        %p464 = pneg %p244
        %s465 = sand.u32 %s234, 1
        %s466 = scalar_lea.sflag [#allocation5], %s465
        %s467 = sand.u32 %s234, 1
        %s468 = smul.addr %s467, 8
        %s469 = scalar_lea.vmem [#allocation12], %s468
        %p471 = scmp.eq.s32.totalorder %s31, 0
        // Predicated region
        $region77: #{tpu_custom_call.1} parent=51 // pred_check
          %p472 = pneg %p471
        $region78: #{tpu_custom_call.1} parent=51 // pred_check_branch
          %474 = sbr.rel (%p472) target = $region80
        $region79: #{tpu_custom_call.1} parent=51 // pred_region
          %v475 = vld [vmem:[%s387] sm:$0xff]
          %v476 = vpack.c.bf16 %v475, %v475
          %v477 = vld [vmem:[#allocation6] sm:$0xf]
          %v478 = vld [vmem:[#allocation6 + $0x4] sm:$0xf]
          %v479 = vld [vmem:[#allocation6 + $0x8] sm:$0xf]
          %v480 = vld [vmem:[#allocation6 + $0xc] sm:$0xf]
          %v481 = vld [vmem:[#allocation6 + $0x10] sm:$0xf]
          %v482 = vld [vmem:[#allocation6 + $0x14] sm:$0xf]
          %v483 = vld [vmem:[#allocation6 + $0x18] sm:$0xf]
          %v484 = vld [vmem:[#allocation6 + $0x1c] sm:$0xf]
          %v485 = vld [vmem:[#allocation6 + $0x20] sm:$0xf]
          %v486 = vld [vmem:[#allocation6 + $0x24] sm:$0xf]
          %v487 = vld [vmem:[#allocation6 + $0x28] sm:$0xf]
          %v488 = vld [vmem:[#allocation6 + $0x2c] sm:$0xf]
          %v489 = vld [vmem:[#allocation6 + $0x30] sm:$0xf]
          %v490 = vld [vmem:[#allocation6 + $0x34] sm:$0xf]
          %v491 = vld [vmem:[#allocation6 + $0x38] sm:$0xf]
          %v492 = vld [vmem:[#allocation6 + $0x3c] sm:$0xf]
          %v493 = vld [vmem:[%s2] sm:$0x1]
          %v495 = vlaneseq
          %v496 = vshrl.u32 %v495, 7
          %v497 = vsub.s32 0, %v496
          %v498 = vrot.slane %v493, %v497
          %v516 = vunpack.c.l.b16 %v477
          %v517 = vunpack.c.l.b16 %v478
          %v518 = vunpack.c.l.b16 %v479
          %v519 = vunpack.c.l.b16 %v480
          %v520 = vunpack.c.l.b16 %v481
          %v521 = vunpack.c.l.b16 %v482
          %v522 = vunpack.c.l.b16 %v483
          %v523 = vunpack.c.l.b16 %v484
          %v524 = vunpack.c.l.b16 %v485
          %v525 = vunpack.c.l.b16 %v486
          %v526 = vunpack.c.l.b16 %v487
          %v527 = vunpack.c.l.b16 %v488
          %v528 = vunpack.c.l.b16 %v489
          %v529 = vunpack.c.l.b16 %v490
          %v530 = vunpack.c.l.b16 %v491
          %v531 = vunpack.c.l.b16 %v492
          %v532 = vpack.c.b16 %v517, %v516
          %v533 = vpack.c.b16 %v519, %v518
          %v534 = vpack.c.b16 %v521, %v520
          %v535 = vpack.c.b16 %v523, %v522
          %v536 = vpack.c.b16 %v525, %v524
          %v537 = vpack.c.b16 %v527, %v526
          %v538 = vpack.c.b16 %v529, %v528
          %v539 = vpack.c.b16 %v531, %v530
          %548 = vmatprep.subr.bf16.mxu0 0
          %549 = vmatpush1.bf16.msra.mxu0 %v532
          %550 = vmatprep.subr.bf16.mxu0 0
          %551 = vmatpush1.bf16.msra.mxu0 %v533
          %552 = vmatprep.subr.bf16.mxu0 0
          %553 = vmatpush1.bf16.msra.mxu0 %v534
          %554 = vmatprep.subr.bf16.mxu0 0
          %555 = vmatpush1.bf16.msra.mxu0 %v535
          %556 = vmatprep.subr.bf16.mxu0 0
          %557 = vmatpush1.bf16.msra.mxu0 %v536
          %558 = vmatprep.subr.bf16.mxu0 0
          %559 = vmatpush1.bf16.msra.mxu0 %v537
          %560 = vmatprep.subr.bf16.mxu0 0
          %561 = vmatpush1.bf16.msra.mxu0 %v538
          %562 = vmatprep.subr.bf16.mxu0 0
          %563 = vmatpush1.bf16.msra.mxu0 %v539
          %564 = vmatprep.subr.bf16.mxu0 0
          %565 = vmatpush1.bf16.msra.mxu0 0
          %566 = vmatprep.subr.bf16.mxu0 0
          %567 = vmatpush1.bf16.msra.mxu0 0
          %568 = vmatprep.subr.bf16.mxu0 0
          %569 = vmatpush1.bf16.msra.mxu0 0
          %570 = vmatprep.subr.bf16.mxu0 0
          %571 = vmatpush1.bf16.msra.mxu0 0
          %572 = vmatprep.subr.bf16.mxu0 0
          %573 = vmatpush1.bf16.msra.mxu0 0
          %574 = vmatprep.subr.bf16.mxu0 0
          %575 = vmatpush1.bf16.msra.mxu0 0
          %576 = vmatprep.subr.bf16.mxu0 0
          %577 = vmatpush1.bf16.msra.mxu0 0
          %578 = vmatprep.subr.bf16.mxu0 0
          %579 = vmatpush1.bf16.msra.mxu0 0
          %580 = vmatprep.mubr.bf16.mxu0 0
          %581 = vmatmul.mubr.bf16.gmra.mrb[0].mxu0 %v476
          %v582 = vpop.f32.mrb[0].mxu0
          %v583 = vadd.f32 %v498, %v582
          %v584 = vpop.f32.mrb[0].mxu0
          %v585 = vpop.f32.mrb[0].mxu0
          %v586 = vpop.f32.mrb[0].mxu0
          %587 = vdwg.mxu0
          %588 = vst [vmem:[#allocation2] sm:$0xff] %v583
        $region80: #{tpu_custom_call.1} parent=51 // pred_fallthru
          _
        %v589 = vld [vmem:[%s409] sm:$0xff]
        %v590 = vld [vmem:[#allocation2] sm:$0xff]
        %591 = vadd.xlane.f32.xlu0 %v590
        %v592 = vpop.xlane.xlu0 %591
        %v593 = vmul.f32 %v592, 0.03125
        %v594 = vmul.f32 %v590, %v590
        %595 = vadd.xlane.f32.xlu0 %v594
        %v596 = vpop.xlane.xlu0 %595
        %v597 = vmul.f32 %v596, 0.03125
        %v598 = vmul.f32 %v593, %v593
        %v599 = vsub.f32 %v597, %v598
        %v600 = vmax.f32 %v599, 0.0
        %v601 = vsub.f32 %v590, %v593
        %v602 = vadd.f32 %v600, 1e-05
        %v603 = vrsqrt.pop %v602
        %v604 = vmul.f32 %v601, %v603
        %v605 = vlaneseq
        %v606 = vshrl.u32 %v605, 7
        %v607 = vsub.s32 1, %v606
        %v608 = vrot.slane %v589, %v607
        %v609 = vmul.f32 %v604, %v608
        %v610 = vlaneseq
        %v611 = vshrl.u32 %v610, 7
        %v612 = vsub.s32 2, %v611
        %v613 = vrot.slane %v589, %v612
        %v614 = vadd.f32 %v609, %v613
        %v615 = vld [vmem:[%s400] sm:$0xff]
        %v616 = vmul.f32 %v615, %v614
        %s617 = scalar_lea.vmem %s400, 8 [#allocation8]
        %v618 = vld [vmem:[%s617] sm:$0xff]
        %v619 = vrot.slane %v614, 7
        %v620 = vmul.f32 %v618, %v619
        %v621 = vadd.f32 %v616, %v620
        %s622 = scalar_lea.vmem %s400, 16 [#allocation8]
        %v623 = vld [vmem:[%s622] sm:$0xff]
        %v624 = vrot.slane %v614, 6
        %v625 = vmul.f32 %v623, %v624
        %v626 = vadd.f32 %v621, %v625
        %s627 = scalar_lea.vmem %s400, 24 [#allocation8]
        %v628 = vld [vmem:[%s627] sm:$0xff]
        %v629 = vrot.slane %v614, 5
        %v630 = vmul.f32 %v628, %v629
        %v631 = vadd.f32 %v626, %v630
        %s632 = scalar_lea.vmem %s400, 32 [#allocation8]
        %v633 = vld [vmem:[%s632] sm:$0xff]
        %v634 = vrot.slane %v614, 4
        %v635 = vmul.f32 %v633, %v634
        %v636 = vadd.f32 %v631, %v635
        %s637 = scalar_lea.vmem %s400, 40 [#allocation8]
        %v638 = vld [vmem:[%s637] sm:$0xff]
        %v639 = vrot.slane %v614, 3
        %v640 = vmul.f32 %v638, %v639
        %v641 = vadd.f32 %v636, %v640
        %s642 = scalar_lea.vmem %s400, 48 [#allocation8]
        %v643 = vld [vmem:[%s642] sm:$0xff]
        %v644 = vrot.slane %v614, 2
        %v645 = vmul.f32 %v643, %v644
        %v646 = vadd.f32 %v641, %v645
        %s647 = scalar_lea.vmem %s400, 56 [#allocation8]
        %v648 = vld [vmem:[%s647] sm:$0xff]
        %v649 = vrot.slane %v614, 1
        %v650 = vmul.f32 %v648, %v649
        %v651 = vadd.f32 %v646, %v650
        %v652 = vlaneseq
        %v653 = vshrl.u32 %v652, 7
        %v654 = vsub.s32 0, %v653
        %v655 = vrot.slane %v589, %v654
        %v656 = vmul.f32 %v614, %v655
        %v657 = vadd.f32 %v651, %v656
        %v658 = vmul.f32 %v657, 0.5
        %v659 = vmul.f32 %v657, 0.70710677
        %vm660 = vcmp.ge.f32.partialorder %v659, 0.0
        %v661 = vsel %vm660, 1.0, -1.0
        %v662 = vmul.f32 %v659, %v661
        %v663 = vmul.f32 %v662, 0.3275911
        %v664 = vadd.f32 %v663, 1.0
        %v665 = vrcp.pop %v664
        %v666 = vmul.f32 %v665, 1.0614054
        %v667 = vadd.f32 %v666, -1.4531521
        %v668 = vmul.f32 %v667, %v665
        %v669 = vadd.f32 %v668, 1.4214138
        %v670 = vmul.f32 %v669, %v665
        %v671 = vadd.f32 %v670, -0.28449672
        %v672 = vmul.f32 %v671, %v665
        %v673 = vadd.f32 %v672, 0.2548296
        %v674 = vmul.f32 %v673, %v665
        %v675 = vsub.f32 0.0, %v662
        %v676 = vmul.f32 %v675, %v662
        %v677 = vmul.f32 %v676, 1.442695
        %v678 = vpow.pop %v677
        %v679 = vmul.f32 %v674, %v678
        %v680 = vsub.f32 1.0, %v679
        %v681 = vmul.f32 %v661, %v680
        %v682 = vadd.f32 %v681, 1.0
        %v683 = vmul.f32 %v658, %v682
        %v684 = vpack.c.bf16 %v683, %v683
        %v685 = vld [vmem:[%s418] sm:$0xff]
        %v686 = vld [vmem:[%s418 + $0x8] sm:$0xff]
        %v687 = vld [vmem:[%s418 + $0x10] sm:$0xff]
        %v688 = vld [vmem:[%s418 + $0x18] sm:$0xff]
        %v689 = vld [vmem:[%s418 + $0x20] sm:$0xff]
        %v690 = vld [vmem:[%s418 + $0x28] sm:$0xff]
        %v691 = vld [vmem:[%s418 + $0x30] sm:$0xff]
        %v692 = vld [vmem:[%s418 + $0x38] sm:$0xff]
        %v693 = vld [vmem:[%s418 + $0x40] sm:$0xff]
        %v694 = vld [vmem:[%s418 + $0x48] sm:$0xff]
        %v695 = vld [vmem:[%s418 + $0x50] sm:$0xff]
        %v696 = vld [vmem:[%s418 + $0x58] sm:$0xff]
        %v697 = vld [vmem:[%s418 + $0x60] sm:$0xff]
        %v698 = vld [vmem:[%s418 + $0x68] sm:$0xff]
        %v699 = vld [vmem:[%s418 + $0x70] sm:$0xff]
        %v700 = vld [vmem:[%s418 + $0x78] sm:$0xff]
        %v717 = vunpack.c.l.b16 %v685
        %v718 = vunpack.c.h.b16 %v685
        %v719 = vunpack.c.l.b16 %v686
        %v720 = vunpack.c.h.b16 %v686
        %v721 = vunpack.c.l.b16 %v687
        %v722 = vunpack.c.h.b16 %v687
        %v723 = vunpack.c.l.b16 %v688
        %v724 = vunpack.c.h.b16 %v688
        %v725 = vunpack.c.l.b16 %v689
        %v726 = vunpack.c.h.b16 %v689
        %v727 = vunpack.c.l.b16 %v690
        %v728 = vunpack.c.h.b16 %v690
        %v729 = vunpack.c.l.b16 %v691
        %v730 = vunpack.c.h.b16 %v691
        %v731 = vunpack.c.l.b16 %v692
        %v732 = vunpack.c.h.b16 %v692
        %v733 = vunpack.c.l.b16 %v693
        %v734 = vunpack.c.h.b16 %v693
        %v735 = vunpack.c.l.b16 %v694
        %v736 = vunpack.c.h.b16 %v694
        %v737 = vunpack.c.l.b16 %v695
        %v738 = vunpack.c.h.b16 %v695
        %v739 = vunpack.c.l.b16 %v696
        %v740 = vunpack.c.h.b16 %v696
        %v741 = vunpack.c.l.b16 %v697
        %v742 = vunpack.c.h.b16 %v697
        %v743 = vunpack.c.l.b16 %v698
        %v744 = vunpack.c.h.b16 %v698
        %v745 = vunpack.c.l.b16 %v699
        %v746 = vunpack.c.h.b16 %v699
        %v747 = vunpack.c.l.b16 %v700
        %v748 = vunpack.c.h.b16 %v700
        %v749 = vpack.c.b16 %v719, %v717
        %v750 = vpack.c.b16 %v720, %v718
        %v751 = vpack.c.b16 %v723, %v721
        %v752 = vpack.c.b16 %v724, %v722
        %v753 = vpack.c.b16 %v727, %v725
        %v754 = vpack.c.b16 %v728, %v726
        %v755 = vpack.c.b16 %v731, %v729
        %v756 = vpack.c.b16 %v732, %v730
        %v757 = vpack.c.b16 %v735, %v733
        %v758 = vpack.c.b16 %v736, %v734
        %v759 = vpack.c.b16 %v739, %v737
        %v760 = vpack.c.b16 %v740, %v738
        %v761 = vpack.c.b16 %v743, %v741
        %v762 = vpack.c.b16 %v744, %v742
        %v763 = vpack.c.b16 %v747, %v745
        %v764 = vpack.c.b16 %v748, %v746
        %781 = vmatprep.subr.bf16.mxu0 %v750
        %782 = vmatpush1.bf16.msra.mxu0 %v749
        %783 = vmatprep.subr.bf16.mxu0 %v752
        %784 = vmatpush1.bf16.msra.mxu0 %v751
        %785 = vmatprep.subr.bf16.mxu0 %v754
        %786 = vmatpush1.bf16.msra.mxu0 %v753
        %787 = vmatprep.subr.bf16.mxu0 %v756
        %788 = vmatpush1.bf16.msra.mxu0 %v755
        %789 = vmatprep.subr.bf16.mxu0 %v758
        %790 = vmatpush1.bf16.msra.mxu0 %v757
        %791 = vmatprep.subr.bf16.mxu0 %v760
        %792 = vmatpush1.bf16.msra.mxu0 %v759
        %793 = vmatprep.subr.bf16.mxu0 %v762
        %794 = vmatpush1.bf16.msra.mxu0 %v761
        %795 = vmatprep.subr.bf16.mxu0 %v764
        %796 = vmatpush1.bf16.msra.mxu0 %v763
        %797 = vmatprep.subr.bf16.mxu0 0
        %798 = vmatpush1.bf16.msra.mxu0 0
        %799 = vmatprep.subr.bf16.mxu0 0
        %800 = vmatpush1.bf16.msra.mxu0 0
        %801 = vmatprep.subr.bf16.mxu0 0
        %802 = vmatpush1.bf16.msra.mxu0 0
        %803 = vmatprep.subr.bf16.mxu0 0
        %804 = vmatpush1.bf16.msra.mxu0 0
        %805 = vmatprep.subr.bf16.mxu0 0
        %806 = vmatpush1.bf16.msra.mxu0 0
        %807 = vmatprep.subr.bf16.mxu0 0
        %808 = vmatpush1.bf16.msra.mxu0 0
        %809 = vmatprep.subr.bf16.mxu0 0
        %810 = vmatpush1.bf16.msra.mxu0 0
        %811 = vmatprep.subr.bf16.mxu0 0
        %812 = vmatpush1.bf16.msra.mxu0 0
        %813 = vmatprep.mubr.bf16.mxu0 0
        %814 = vmatmul.mubr.bf16.gmra.mrb[0].mxu0 %v684
        %v815 = vpop.f32.mrb[0].mxu0
        %v816 = vadd.f32 0.0, %v815
        %v817 = vpop.f32.mrb[0].mxu0
        %v818 = vadd.f32 0.0, %v817
        %v819 = vpop.f32.mrb[0].mxu0
        %v820 = vpop.f32.mrb[0].mxu0
        %821 = vdwg.mxu0
        %v822 = vlaneseq
        %v823 = vshrl.u32 %v822, 7
        %v824 = vsub.s32 3, %v823
        %v825 = vrot.slane %v589, %v824
        %v826 = vadd.f32 %v816, %v825
        %v827 = vlaneseq
        %v828 = vshrl.u32 %v827, 7
        %v829 = vsub.s32 4, %v828
        %v830 = vrot.slane %v589, %v829
        %v831 = vadd.f32 %v818, %v830
        %v832 = vxor.u32 %v831, 2147483648
        %v833 = vmul.f32 %v832, 1.442695
        %v834 = vpow.pop %v833
        %v835 = vadd.f32 %v834, 1.0
        %v836 = vrcp.pop %v835
        %v837 = vmul.f32 1.0, %v836
        %v838 = vmul.f32 %v826, %v837
        %v839 = vadd.f32 %v838, %v590
        %840 = vst [vmem:[#allocation2] sm:$0xff] %v839
        %p841 = scmp.eq.s32.totalorder %s31, 1
        // Predicated region
        $region81: #{tpu_custom_call.1} parent=51 // pred_check
          %p842 = pneg %p841
        $region82: #{tpu_custom_call.1} parent=51 // pred_check_branch
          %844 = sbr.rel (%p842) target = $region84
        $region83: #{tpu_custom_call.1} parent=51 // pred_region
          %v845 = vpack.c.bf16 %v839, %v839
          %v846 = vld [vmem:[#allocation11] sm:$0xf]
          %v847 = vld [vmem:[#allocation11 + $0x4] sm:$0xf]
          %v848 = vld [vmem:[#allocation11 + $0x8] sm:$0xf]
          %v849 = vld [vmem:[#allocation11 + $0xc] sm:$0xf]
          %v850 = vld [vmem:[#allocation11 + $0x10] sm:$0xf]
          %v851 = vld [vmem:[#allocation11 + $0x14] sm:$0xf]
          %v852 = vld [vmem:[#allocation11 + $0x18] sm:$0xf]
          %v853 = vld [vmem:[#allocation11 + $0x1c] sm:$0xf]
          %v854 = vld [vmem:[#allocation11 + $0x20] sm:$0xf]
          %v855 = vld [vmem:[#allocation11 + $0x24] sm:$0xf]
          %v856 = vld [vmem:[#allocation11 + $0x28] sm:$0xf]
          %v857 = vld [vmem:[#allocation11 + $0x2c] sm:$0xf]
          %v858 = vld [vmem:[#allocation11 + $0x30] sm:$0xf]
          %v859 = vld [vmem:[#allocation11 + $0x34] sm:$0xf]
          %v860 = vld [vmem:[#allocation11 + $0x38] sm:$0xf]
          %v861 = vld [vmem:[#allocation11 + $0x3c] sm:$0xf]
          %v862 = vld [vmem:[%s7] sm:$0x1]
          %v864 = vlaneseq
          %v865 = vshrl.u32 %v864, 7
          %v866 = vsub.s32 0, %v865
          %v867 = vrot.slane %v862, %v866
          %v885 = vunpack.c.l.b16 %v846
          %v886 = vunpack.c.l.b16 %v847
          %v887 = vunpack.c.l.b16 %v848
          %v888 = vunpack.c.l.b16 %v849
          %v889 = vunpack.c.l.b16 %v850
          %v890 = vunpack.c.l.b16 %v851
          %v891 = vunpack.c.l.b16 %v852
          %v892 = vunpack.c.l.b16 %v853
          %v893 = vunpack.c.l.b16 %v854
          %v894 = vunpack.c.l.b16 %v855
          %v895 = vunpack.c.l.b16 %v856
          %v896 = vunpack.c.l.b16 %v857
          %v897 = vunpack.c.l.b16 %v858
          %v898 = vunpack.c.l.b16 %v859
          %v899 = vunpack.c.l.b16 %v860
          %v900 = vunpack.c.l.b16 %v861
          %v901 = vpack.c.b16 %v886, %v885
          %v902 = vpack.c.b16 %v888, %v887
          %v903 = vpack.c.b16 %v890, %v889
          %v904 = vpack.c.b16 %v892, %v891
          %v905 = vpack.c.b16 %v894, %v893
          %v906 = vpack.c.b16 %v896, %v895
          %v907 = vpack.c.b16 %v898, %v897
          %v908 = vpack.c.b16 %v900, %v899
          %917 = vmatprep.subr.bf16.mxu0 0
          %918 = vmatpush1.bf16.msra.mxu0 %v901
          %919 = vmatprep.subr.bf16.mxu0 0
          %920 = vmatpush1.bf16.msra.mxu0 %v902
          %921 = vmatprep.subr.bf16.mxu0 0
          %922 = vmatpush1.bf16.msra.mxu0 %v903
          %923 = vmatprep.subr.bf16.mxu0 0
          %924 = vmatpush1.bf16.msra.mxu0 %v904
          %925 = vmatprep.subr.bf16.mxu0 0
          %926 = vmatpush1.bf16.msra.mxu0 %v905
          %927 = vmatprep.subr.bf16.mxu0 0
          %928 = vmatpush1.bf16.msra.mxu0 %v906
          %929 = vmatprep.subr.bf16.mxu0 0
          %930 = vmatpush1.bf16.msra.mxu0 %v907
          %931 = vmatprep.subr.bf16.mxu0 0
          %932 = vmatpush1.bf16.msra.mxu0 %v908
          %933 = vmatprep.subr.bf16.mxu0 0
          %934 = vmatpush1.bf16.msra.mxu0 0
          %935 = vmatprep.subr.bf16.mxu0 0
          %936 = vmatpush1.bf16.msra.mxu0 0
          %937 = vmatprep.subr.bf16.mxu0 0
          %938 = vmatpush1.bf16.msra.mxu0 0
          %939 = vmatprep.subr.bf16.mxu0 0
          %940 = vmatpush1.bf16.msra.mxu0 0
          %941 = vmatprep.subr.bf16.mxu0 0
          %942 = vmatpush1.bf16.msra.mxu0 0
          %943 = vmatprep.subr.bf16.mxu0 0
          %944 = vmatpush1.bf16.msra.mxu0 0
          %945 = vmatprep.subr.bf16.mxu0 0
          %946 = vmatpush1.bf16.msra.mxu0 0
          %947 = vmatprep.subr.bf16.mxu0 0
          %948 = vmatpush1.bf16.msra.mxu0 0
          %949 = vmatprep.mubr.bf16.mxu0 0
          %950 = vmatmul.mubr.bf16.gmra.mrb[0].mxu0 %v845
          %v951 = vpop.f32.mrb[0].mxu0
          %v952 = vadd.f32 %v867, %v951
          %v953 = vpop.f32.mrb[0].mxu0
          %v954 = vpop.f32.mrb[0].mxu0
          %v955 = vpop.f32.mrb[0].mxu0
          %956 = vdwg.mxu0
          %957 = vst [vmem:[%s469] sm:$0xff] %v952
        $region84: #{tpu_custom_call.1} parent=51 // pred_fallthru
          _
        %s958 = sand.u32 %s234, 1
        %s959 = scalar_lea.sflag [#allocation5], %s958
        %s960 = sand.u32 %s234, 1
        %s961 = smul.addr %s960, 8
        %s962 = scalar_lea.vmem [#allocation12], %s961
        // Predicated region
        $region85: #{tpu_custom_call.1} parent=51 // pred_check
          %p963 = pneg %p244
        $region86: #{tpu_custom_call.1} parent=51 // pred_check_branch
          %965 = sbr.rel (%p963) target = $region88
        $region87: #{tpu_custom_call.1} parent=51 // pred_region
          %s967 = ssub.s32 128, 128
          %968 = vsyncadd %s959, %s967
          %s969 = smul.addr %s30, 128
          %s970 = scalar_lea.hbm %s8, %s969
          %s972 = sshll.u32 %s962, 4
          %s973 = int_to_ptr.vmem [resolvable:$true] %s972
          %975 = dma.vmem_to_hbm [thread:$0]  %s973, 128, %s970, %s959
        $region88: #{tpu_custom_call.1} parent=51 // pred_fallthru
          _
      $region52: #{tpu_custom_call.1} parent=5 // pred_fallthru
        _
      %p976 = scmp.le.s32.totalorder 2, %s21
      // Predicated region
      $region89: #{tpu_custom_call.1} parent=5 // pred_check
        %p977 = pneg %p976
      $region90: #{tpu_custom_call.1} parent=5 // pred_check_branch
        %979 = sbr.rel (%p977) target = $region92
      $region91: #{tpu_custom_call.1} parent=5 // pred_region
        %s980 = ssub.s32 %s21, 2
        // Predicated region
        $region93: #{tpu_custom_call.1} parent=91 // pred_check
          %p981 = pneg %p250
        $region94: #{tpu_custom_call.1} parent=91 // pred_check_branch
          %983 = sbr.rel (%p981) target = $region96
        $region95: #{tpu_custom_call.1} parent=91 // pred_region
          %s984 = sand.u32 %s235, 1
          %s985 = scalar_lea.sflag [#allocation5], %s984
          %s986 = sand.u32 %s235, 1
          %s987 = smul.addr %s986, 8
          %s988 = scalar_lea.vmem [#allocation12], %s987
          %989 = dma.done %s985, 128
        $region96: #{tpu_custom_call.1} parent=91 // pred_fallthru
          _
      $region92: #{tpu_custom_call.1} parent=5 // pred_fallthru
        _
    $region6: #{tpu_custom_call.1} parent=1 // loop_footer
      %s25 = sadd.s32 1, %s21
    $region7: #{tpu_custom_call.1} parent=1 // loop_footer_branch
      %20 = sbr.rel target = $region3
    $region8: #{tpu_custom_call.1} parent=1 // loop_exit
      _
    %990 = vsyncpa [#allocation4], 1
    %s991 = scalar_lea.sflag [#allocation4], 1
    %992 = vsyncpa %s991, 1
    %993 = vsyncpa [#allocation7], 1
    %994 = vsyncpa [#allocation5], 1
    %s995 = scalar_lea.sflag [#allocation5], 1
    %996 = vsyncpa %s995, 1

</llo_original>
